<compile_context>
chip_gen: v5e
topology: v5e:2x2
jax: 0.10.0
libtpu: 0.0.40
codegen_flags: <defaults>
</compile_context>

<pallas_src>
import functools

import jax
import jax.numpy as jnp
from jax.experimental import pallas as pl
from jax.experimental.pallas import tpu as pltpu


# ---------------------------------------------------------------------------
# Kernels
# ---------------------------------------------------------------------------

def _rope_kernel_split(x_ref, cos_ref, ssin_ref, o_ref):
    # x_ref/o_ref: (ts, H, D); cos/ssin: (ts, D) f32, broadcast over heads.
    x = x_ref[...].astype(jnp.float32)
    cos = cos_ref[...][:, None, :]      # (ts, 1, D)
    ssin = ssin_ref[...][:, None, :]    # (ts, 1, D), rotate_half sign folded in
    d = x.shape[-1]
    # roll by exactly D/2 of a size-D axis is direction agnostic -> XLU slot.
    rolled = pltpu.roll(x, shift=d // 2, axis=x.ndim - 1)
    o_ref[...] = (x * cos + rolled * ssin).astype(o_ref.dtype)


def _rope_kernel_flat(x_ref, cos_ref, slo_ref, shi_ref, o_ref, *, half):
    # Lane-dense path.  x_ref/o_ref: (ts, H*D); tables: (ts, H*D) f32.
    #   out = x*cos + roll(x, -half)*ssin_lo + roll(x, +half)*ssin_hi
    # ssin_lo / ssin_hi are zero on the lanes where the corresponding roll
    # would cross a head boundary, so rotate_half never mixes heads.
    x = x_ref[...].astype(jnp.float32)
    r_lo = jnp.roll(x, -half, axis=-1)   # lane i picks x[i + half]  (jnp semantics)
    r_hi = jnp.roll(x, half, axis=-1)    # lane i picks x[i - half]
    out = x * cos_ref[...] + r_lo * slo_ref[...] + r_hi * shi_ref[...]
    o_ref[...] = out.astype(o_ref.dtype)


# ---------------------------------------------------------------------------
# Tiling helpers
# ---------------------------------------------------------------------------

_VMEM_BUDGET_BYTES = 24 * 1024 * 1024   # total double-buffered working set
_VMEM_LIMIT_BYTES = 32 * 1024 * 1024    # safe scoped limit on v5e/v6e/v7x


def _round_up(x, m):
    return (x + m - 1) // m * m


def _padded_tile_bytes(second_minor, minor, dtype):
    """VMEM bytes of one (second_minor, minor) tile incl. (8,128)-style padding."""
    itemsize = jnp.dtype(dtype).itemsize
    sublane = 8 * max(1, 4 // itemsize)      # 8 for f32, 16 for bf16, 32 for int8
    return _round_up(second_minor, sublane) * _round_up(minor, 128) * itemsize


def _pick_seq_tile(S, B, per_row_bytes):
    """Largest seq tile whose double-buffered working set fits the budget."""
    if S <= 8:
        return S                              # whole (tiny) sequence in one block
    ts = _VMEM_BUDGET_BYTES // (2 * max(per_row_bytes, 1))
    ts = max(8, (min(ts, S) // 8) * 8)
    # v7x has 2 TensorCores: with B == 1 make sure there are >= 2 blocks.
    if B == 1 and pl.cdiv(S, ts) == 1 and S >= 16:
        ts = max(8, _round_up(pl.cdiv(S, 2), 8))
    return ts


# ---------------------------------------------------------------------------
# Table construction (done once, mirrors the PyTorch registered buffer)
# ---------------------------------------------------------------------------

def make_freqs(max_seq_len, head_dim):
    """(S, D) freq table: cat([t * inv_freq, t * inv_freq], -1)."""
    inv_freq = 1.0 / (10000.0 ** (jnp.arange(0, head_dim, 2, dtype=jnp.float32)
                                  / head_dim))
    t = jnp.arange(max_seq_len, dtype=jnp.float32)
    freqs = jnp.einsum("i,j->ij", t, inv_freq)          # (S, D/2)
    return jnp.concatenate([freqs, freqs], axis=-1)     # (S, D)


def init_rotary(max_seq_len, head_dim, num_heads):
    """Precompute cos / signed-sin tables once (the module's __init__)."""
    assert head_dim % 2 == 0
    half = head_dim // 2
    freqs = make_freqs(max_seq_len, head_dim)
    cos = jnp.cos(freqs)                                 # (S, D) f32
    sin = jnp.sin(freqs)

    hd = num_heads * head_dim
    use_flat = (num_heads > 1 and hd % 128 == 0
                and not (num_heads % 8 == 0 and head_dim % 128 == 0))

    if use_flat:
        zeros = jnp.zeros((max_seq_len, half), jnp.float32)
        ssin_lo = jnp.concatenate([-sin[:, :half], zeros], axis=-1)   # (S, D)
        ssin_hi = jnp.concatenate([zeros, sin[:, half:]], axis=-1)    # (S, D)
        tables = (jnp.tile(cos, (1, num_heads)),        # (S, H*D)
                  jnp.tile(ssin_lo, (1, num_heads)),
                  jnp.tile(ssin_hi, (1, num_heads)))
    else:
        signed_sin = jnp.concatenate([-sin[:, :half], sin[:, half:]], axis=-1)
        tables = (cos, signed_sin)                      # (S, D) each

    return {"head_dim": head_dim, "num_heads": num_heads,
            "max_seq_len": max_seq_len, "flat": use_flat, "tables": tables}


# ---------------------------------------------------------------------------
# Forward
# ---------------------------------------------------------------------------

def rotary_embedding(x, rope):
    """x: (B, S, H, D) float32/bf16.  rope: output of init_rotary."""
    B, S, H, D = x.shape
    assert D == rope["head_dim"]
    assert S <= rope["max_seq_len"]
    tables = tuple(t if t.shape[0] == S else t[:S] for t in rope["tables"])
    itemsize = jnp.dtype(x.dtype).itemsize

    if rope["flat"]:
        assert H == rope["num_heads"]
        hd = H * D
        # per-seq-row working set: x in + x out + 3 f32 tables (all lane-dense)
        per_row = hd * (2 * itemsize) + 3 * hd * 4
        ts = _pick_seq_tile(S, B, per_row)
        grid = (pl.cdiv(S, ts), B)
        cos_f, slo_f, shi_f = tables
        kernel = functools.partial(_rope_kernel_flat, half=D // 2)
        x_in = x.reshape(B, S, hd)                      # free: merges trailing dims
        out = pl.pallas_call(
            kernel,
            out_shape=jax.ShapeDtypeStruct((B, S, hd), x.dtype),
            grid=grid,
            in_specs=[
                pl.BlockSpec((None, ts, hd), lambda s, b: (b, s, 0)),
                pl.BlockSpec((ts, hd), lambda s, b: (s, 0)),
                pl.BlockSpec((ts, hd), lambda s, b: (s, 0)),
                pl.BlockSpec((ts, hd), lambda s, b: (s, 0)),
            ],
            out_specs=pl.BlockSpec((None, ts, hd), lambda s, b: (b, s, 0)),
            compiler_params=pltpu.CompilerParams(
                dimension_semantics=("parallel", "parallel"),
                vmem_limit_bytes=_VMEM_LIMIT_BYTES),
            cost_estimate=pl.CostEstimate(
                flops=int(5 * x.size),
                transcendentals=0,
                bytes_accessed=int(2 * x.size * itemsize + 3 * S * hd * 4)),
        )(x_in, cos_f, slo_f, shi_f)
        return out.reshape(B, S, H, D)

    # Generic per-head path: blocks are (ts, H, D), tables (ts, D).
    cos, ssin = tables
    per_row = 2 * _padded_tile_bytes(H, D, x.dtype) + 2 * _round_up(D, 128) * 4
    ts = _pick_seq_tile(S, B, per_row)
    grid = (pl.cdiv(S, ts), B)
    return pl.pallas_call(
        _rope_kernel_split,
        out_shape=jax.ShapeDtypeStruct((B, S, H, D), x.dtype),
        grid=grid,
        in_specs=[
            pl.BlockSpec((None, ts, H, D), lambda s, b: (b, s, 0, 0)),
            pl.BlockSpec((ts, D), lambda s, b: (s, 0)),
            pl.BlockSpec((ts, D), lambda s, b: (s, 0)),
        ],
        out_specs=pl.BlockSpec((None, ts, H, D), lambda s, b: (b, s, 0, 0)),
        compiler_params=pltpu.CompilerParams(
            dimension_semantics=("parallel", "parallel"),
            vmem_limit_bytes=_VMEM_LIMIT_BYTES),
        cost_estimate=pl.CostEstimate(
            flops=int(3 * x.size),
            transcendentals=0,
            bytes_accessed=int(2 * x.size * itemsize + 2 * S * D * 4)),
    )(x, cos, ssin)


# ---------------------------------------------------------------------------
# Pure-JAX reference (mirrors the PyTorch forward)
# ---------------------------------------------------------------------------

def rotary_reference(x, freqs):
    cos = jnp.cos(freqs)[None, :, None, :]
    sin = jnp.sin(freqs)[None, :, None, :]
    d_half = x.shape[-1] // 2
    x1, x2 = x[..., :d_half], x[..., d_half:]
    rot = jnp.concatenate([-x2, x1], axis=-1)
    return x * cos + rot * sin


if __name__ == "__main__":
    key = jax.random.PRNGKey(0)

    configs = [
        (2, 16, 4, 32),   # lane-dense flat path (H*D == 128)
        (2, 8, 2, 32),    # generic per-head path (H*D not a multiple of 128)
        (1, 12, 8, 32),   # ragged S exercising the pl.cdiv grid (flat path)
    ]
    for i, (B, S, H, D) in enumerate(configs):
        k = jax.random.fold_in(key, i)
        x = jax.random.normal(k, (B, S, H, D), dtype=jnp.float32)
        rope = init_rotary(max_seq_len=S, head_dim=D, num_heads=H)

        out = jax.block_until_ready(rotary_embedding(x, rope))
        ref = rotary_reference(x, make_freqs(S, D))

        assert out.shape == (B, S, H, D)
        assert jnp.allclose(out, ref, atol=1e-5, rtol=1e-5), f"mismatch: config {i}"

    print("KERNEL_OK")
</pallas_src>

<mosaic_0001>
module attributes {stable_mosaic.version = 11 : i64} {
  func.func @_rope_kernel_flat(%arg0: i32, %arg1: i32, %arg2: memref<1x16x128xf32, #tpu.memory_space<vmem>>, %arg3: memref<16x128xf32, #tpu.memory_space<vmem>>, %arg4: memref<16x128xf32, #tpu.memory_space<vmem>>, %arg5: memref<16x128xf32, #tpu.memory_space<vmem>>, %arg6: memref<1x16x128xf32, #tpu.memory_space<vmem>>) attributes {dimension_semantics = [#tpu.dimension_semantics<parallel>, #tpu.dimension_semantics<parallel>], iteration_bounds = array<i64: 1, 2>, scalar_prefetch = 0 : i64, scratch_operands = 0 : i64, tpu.core_type = #tpu.core_type<tc>, window_params = [{transform_indices = @transform_0, window_bounds = array<i64: 1, 16, 128>}, {transform_indices = @transform_1, window_bounds = array<i64: 16, 128>}, {transform_indices = @transform_2, window_bounds = array<i64: 16, 128>}, {transform_indices = @transform_3, window_bounds = array<i64: 16, 128>}, {transform_indices = @transform_4, window_bounds = array<i64: 1, 16, 128>}]} {
    %c0 = arith.constant 0 : index
    %c0_0 = arith.constant 0 : index
    %c0_1 = arith.constant 0 : index
    %0 = vector.load %arg2[%c0, %c0_0, %c0_1] : memref<1x16x128xf32, #tpu.memory_space<vmem>>, vector<1x16x128xf32>
    %1 = vector.shape_cast %0 : vector<1x16x128xf32> to vector<16x128xf32>
    %2 = vector.extract_strided_slice %1 {offsets = [0, 16], sizes = [16, 112], strides = [1, 1]} : vector<16x128xf32> to vector<16x112xf32>
    %3 = vector.extract_strided_slice %1 {offsets = [0, 0], sizes = [16, 16], strides = [1, 1]} : vector<16x128xf32> to vector<16x16xf32>
    %4 = tpu.concatenate %2, %3 in 1 : vector<16x112xf32>, vector<16x16xf32> -> vector<16x128xf32>
    %5 = vector.extract_strided_slice %1 {offsets = [0, 112], sizes = [16, 16], strides = [1, 1]} : vector<16x128xf32> to vector<16x16xf32>
    %6 = vector.extract_strided_slice %1 {offsets = [0, 0], sizes = [16, 112], strides = [1, 1]} : vector<16x128xf32> to vector<16x112xf32>
    %7 = tpu.concatenate %5, %6 in 1 : vector<16x16xf32>, vector<16x112xf32> -> vector<16x128xf32>
    %c0_2 = arith.constant 0 : index
    %c0_3 = arith.constant 0 : index
    %8 = vector.load %arg3[%c0_2, %c0_3] : memref<16x128xf32, #tpu.memory_space<vmem>>, vector<16x128xf32>
    %9 = arith.mulf %1, %8 : vector<16x128xf32>
    %c0_4 = arith.constant 0 : index
    %c0_5 = arith.constant 0 : index
    %10 = vector.load %arg4[%c0_4, %c0_5] : memref<16x128xf32, #tpu.memory_space<vmem>>, vector<16x128xf32>
    %11 = arith.mulf %4, %10 : vector<16x128xf32>
    %12 = arith.addf %9, %11 : vector<16x128xf32>
    %c0_6 = arith.constant 0 : index
    %c0_7 = arith.constant 0 : index
    %13 = vector.load %arg5[%c0_6, %c0_7] : memref<16x128xf32, #tpu.memory_space<vmem>>, vector<16x128xf32>
    %14 = arith.mulf %7, %13 : vector<16x128xf32>
    %15 = arith.addf %12, %14 : vector<16x128xf32>
    %c0_8 = arith.constant 0 : index
    %c0_9 = arith.constant 0 : index
    %c0_10 = arith.constant 0 : index
    %16 = vector.load %arg6[%c0_8, %c0_9, %c0_10] : memref<1x16x128xf32, #tpu.memory_space<vmem>>, vector<1x16x128xf32>
    %17 = vector.shape_cast %16 : vector<1x16x128xf32> to vector<16x128xf32>
    %18 = vector.shape_cast %15 : vector<16x128xf32> to vector<1x16x128xf32>
    tpu.vector_store %arg6[%c0_8, %c0_9, %c0_10], %18 {strides = array<i32>} : memref<1x16x128xf32, #tpu.memory_space<vmem>>, vector<1x16x128xf32>,
    return
  }
  func.func @transform_0(%arg0: i32, %arg1: i32) -> (i32, i32, i32) {
    %c0_i32 = arith.constant 0 : i32
    %c0_i32_0 = arith.constant 0 : i32
    return %arg1, %arg0, %c0_i32 : i32, i32, i32
  }
  func.func @transform_1(%arg0: i32, %arg1: i32) -> (i32, i32) {
    %c0_i32 = arith.constant 0 : i32
    %c0_i32_0 = arith.constant 0 : i32
    return %arg0, %c0_i32 : i32, i32
  }
  func.func @transform_2(%arg0: i32, %arg1: i32) -> (i32, i32) {
    %c0_i32 = arith.constant 0 : i32
    %c0_i32_0 = arith.constant 0 : i32
    return %arg0, %c0_i32 : i32, i32
  }
  func.func @transform_3(%arg0: i32, %arg1: i32) -> (i32, i32) {
    %c0_i32 = arith.constant 0 : i32
    %c0_i32_0 = arith.constant 0 : i32
    return %arg0, %c0_i32 : i32, i32
  }
  func.func @transform_4(%arg0: i32, %arg1: i32) -> (i32, i32, i32) {
    %c0_i32 = arith.constant 0 : i32
    %c0_i32_0 = arith.constant 0 : i32
    return %arg1, %arg0, %c0_i32 : i32, i32, i32
  }
}

</mosaic_0001>

<llo_original>
// kernel: tpu_custom_call.1
$region0: #{tpu_custom_call.1}
  #allocation0 [shape = 'u32[]', space=smem, size = 0x4, offset = 0x4, fixed_abs, tag = 'smem constant byte address 0x4 - core index']
  #allocation1 [shape = 'u32[72,128]{1,0:T(1,128)}', space=vmem, size = 0x9000, scoped, tag = 'internal scratch']
  %s0 = inlined_call_operand.hbm [shape: f32[2,16,128], index: 0, kind: input, shape index: {}]
  %s1 = inlined_call_operand.hbm [shape: f32[16,128], index: 1, kind: input, shape index: {}]
  %s2 = inlined_call_operand.hbm [shape: f32[16,128], index: 2, kind: input, shape index: {}]
  %s3 = inlined_call_operand.hbm [shape: f32[16,128], index: 3, kind: input, shape index: {}]
  %s4 = inlined_call_operand.hbm [shape: f32[2,16,128], index: 4, kind: output, shape index: {}]
  %s5 = sld [smem:[#allocation0]]
  $region65: #{tpu_custom_call.1} parent=0
    _
  %s7 = ssub.s32 1, %s5
  %s8 = scalar_select 0, %s7, %s5
  $region1: #{tpu_custom_call.1} parent=0
    #allocation2 [shape = 'u8[16384]{0}', space=vmem, size = 0x4000, scoped, tag = 'input window, operand 0']
    #allocation3 [shape = 's32[2]{0}', space=sflag, size = 0x8, scoped, tag = 'scoped memory for tpu_custom_call.1']
    #allocation4 [shape = 's32[2]{0}', space=sflag, size = 0x8, scoped, tag = 'scoped memory for tpu_custom_call.1']
    #allocation5 [shape = 'u8[8192]{0}', space=vmem, size = 0x2000, scoped, tag = 'input window, operand 1, single buffered']
    #allocation6 [shape = 's32[1]{0}', space=sflag, size = 0x4, scoped, tag = 'scoped memory for tpu_custom_call.1']
    #allocation7 [shape = 'u8[8192]{0}', space=vmem, size = 0x2000, scoped, tag = 'input window, operand 2, single buffered']
    #allocation8 [shape = 'u8[8192]{0}', space=vmem, size = 0x2000, scoped, tag = 'input window, operand 3, single buffered']
    #allocation9 [shape = 's32[1]{0}', space=sflag, size = 0x4, scoped, tag = 'scoped memory for tpu_custom_call.1']
    #allocation10 [shape = 'u8[16384]{0}', space=vmem, size = 0x4000, scoped, tag = 'output window, operand 0']
    %9 = vsyncpa [#allocation3], 0
    %s10 = scalar_lea.sflag [#allocation3], 1
    %11 = vsyncpa %s10, 0
    %12 = vsyncpa [#allocation6], 0
    %13 = vsyncpa [#allocation9], 0
    %14 = vsyncpa [#allocation4], 0
    %s15 = scalar_lea.sflag [#allocation4], 1
    %16 = vsyncpa %s15, 0
    loop: start=0, step=1, limit=4
    $region2: #{tpu_custom_call.1} parent=1 // loop_pre_header
      _
    $region3: #{tpu_custom_call.1} parent=1 // loop_header
      %s18 = sphi 0, %s22
      %p19 = scmp.ge.s32.totalorder %s18, 4
      %s25 = sphi 0, %s37
      %s26 = sphi 0, %s33
      %s27 = sphi 0, %s25
      %s28 = sphi 0, %s26
      %s29 = sphi 0, %s27
      %s30 = sphi 0, %s28
      %s42 = sphi 0, %s44
      %s45 = sphi 0, %s42
      %s46 = sphi 0, %s45
      %s62 = sphi 0, %s46
      %s68 = sphi 0, %s70
      %s71 = sphi 0, %s68
      %s72 = sphi 0, %s71
      %s88 = sphi 0, %s72
      %s94 = sphi 0, %s96
      %s97 = sphi 0, %s94
      %s98 = sphi 0, %s97
      %s114 = sphi 0, %s98
      %s120 = sphi 0, %s122
      %s123 = sphi 0, %s120
      %s124 = sphi 0, %s123
      %s140 = sphi 0, %s124
      %s148 = sphi 0, %s150
      %s151 = sphi 0, %s148
      %s152 = sphi 0, %s151
      %s168 = sphi 0, %s152
    $region4: #{tpu_custom_call.1} parent=1 // loop_header_branch
      %21 = sbr.rel (%p19) target = $region8
    $region5: #{tpu_custom_call.1} parent=1 // loop_body
      %s23 = ssub.s32 %s18, 1
      %s24 = ssub.s32 %s18, 2
      %s31 = sadd.s32 1, %s26
      %p32 = scmp.ge.s32.totalorder %s31, 2
      %s33 = scalar_select %p32, 0, %s31
      %s34 = sadd.s32 1, %s25
      %s35 = scalar_select %p32, %s34, %s25
      %p36 = scmp.ge.s32.totalorder %s35, 1
      %s37 = scalar_select %p36, 0, %s35
      %s38 = ssub.s32 %s26, %s33
      %s39 = ssub.s32 %s25, %s37
      %s40 = sor.u32 %s38, %s39
      %p41 = scmp.eq.s32.totalorder %s40, 0
      %s43 = sadd.s32 %s42, 1
      %s44 = scalar_select %p41, %s42, %s43
      %p47 = pneg %p41
      %p48 = scmp.eq.s32.totalorder %s18, 1
      %p49 = por %p47, %p48
      %p50 = scmp.ne.s32.totalorder %s42, %s45
      %p51 = scmp.eq.s32.totalorder %s18, 0
      %p52 = por %p50, %p51
      %p53 = scmp.ne.s32.totalorder %s42, %s45
      %p54 = scmp.eq.s32.totalorder %s23, 1
      %p55 = por %p53, %p54
      %p56 = scmp.ne.s32.totalorder %s45, %s46
      %p57 = scmp.eq.s32.totalorder %s23, 0
      %p58 = por %p56, %p57
      %p59 = scmp.ne.s32.totalorder %s45, %s46
      %p60 = scmp.eq.s32.totalorder %s24, 1
      %p61 = por %p59, %p60
      %p63 = scmp.ne.s32.totalorder %s46, %s62
      %p64 = scmp.eq.s32.totalorder %s24, 0
      %p65 = por %p63, %p64
      %s66 = ssub.s32 %s25, %s37
      %p67 = scmp.eq.s32.totalorder %s66, 0
      %s69 = sadd.s32 %s68, 1
      %s70 = scalar_select %p67, %s68, %s69
      %p73 = pneg %p67
      %p74 = scmp.eq.s32.totalorder %s18, 1
      %p75 = por %p73, %p74
      %p76 = scmp.ne.s32.totalorder %s68, %s71
      %p77 = scmp.eq.s32.totalorder %s18, 0
      %p78 = por %p76, %p77
      %p79 = scmp.ne.s32.totalorder %s68, %s71
      %p80 = scmp.eq.s32.totalorder %s23, 1
      %p81 = por %p79, %p80
      %p82 = scmp.ne.s32.totalorder %s71, %s72
      %p83 = scmp.eq.s32.totalorder %s23, 0
      %p84 = por %p82, %p83
      %p85 = scmp.ne.s32.totalorder %s71, %s72
      %p86 = scmp.eq.s32.totalorder %s24, 1
      %p87 = por %p85, %p86
      %p89 = scmp.ne.s32.totalorder %s72, %s88
      %p90 = scmp.eq.s32.totalorder %s24, 0
      %p91 = por %p89, %p90
      %s92 = ssub.s32 %s25, %s37
      %p93 = scmp.eq.s32.totalorder %s92, 0
      %s95 = sadd.s32 %s94, 1
      %s96 = scalar_select %p93, %s94, %s95
      %p99 = pneg %p93
      %p100 = scmp.eq.s32.totalorder %s18, 1
      %p101 = por %p99, %p100
      %p102 = scmp.ne.s32.totalorder %s94, %s97
      %p103 = scmp.eq.s32.totalorder %s18, 0
      %p104 = por %p102, %p103
      %p105 = scmp.ne.s32.totalorder %s94, %s97
      %p106 = scmp.eq.s32.totalorder %s23, 1
      %p107 = por %p105, %p106
      %p108 = scmp.ne.s32.totalorder %s97, %s98
      %p109 = scmp.eq.s32.totalorder %s23, 0
      %p110 = por %p108, %p109
      %p111 = scmp.ne.s32.totalorder %s97, %s98
      %p112 = scmp.eq.s32.totalorder %s24, 1
      %p113 = por %p111, %p112
      %p115 = scmp.ne.s32.totalorder %s98, %s114
      %p116 = scmp.eq.s32.totalorder %s24, 0
      %p117 = por %p115, %p116
      %s118 = ssub.s32 %s25, %s37
      %p119 = scmp.eq.s32.totalorder %s118, 0
      %s121 = sadd.s32 %s120, 1
      %s122 = scalar_select %p119, %s120, %s121
      %p125 = pneg %p119
      %p126 = scmp.eq.s32.totalorder %s18, 1
      %p127 = por %p125, %p126
      %p128 = scmp.ne.s32.totalorder %s120, %s123
      %p129 = scmp.eq.s32.totalorder %s18, 0
      %p130 = por %p128, %p129
      %p131 = scmp.ne.s32.totalorder %s120, %s123
      %p132 = scmp.eq.s32.totalorder %s23, 1
      %p133 = por %p131, %p132
      %p134 = scmp.ne.s32.totalorder %s123, %s124
      %p135 = scmp.eq.s32.totalorder %s23, 0
      %p136 = por %p134, %p135
      %p137 = scmp.ne.s32.totalorder %s123, %s124
      %p138 = scmp.eq.s32.totalorder %s24, 1
      %p139 = por %p137, %p138
      %p141 = scmp.ne.s32.totalorder %s124, %s140
      %p142 = scmp.eq.s32.totalorder %s24, 0
      %p143 = por %p141, %p142
      %s144 = ssub.s32 %s26, %s33
      %s145 = ssub.s32 %s25, %s37
      %s146 = sor.u32 %s144, %s145
      %p147 = scmp.eq.s32.totalorder %s146, 0
      %s149 = sadd.s32 %s148, 1
      %s150 = scalar_select %p147, %s148, %s149
      %p153 = pneg %p147
      %p154 = scmp.eq.s32.totalorder %s18, 1
      %p155 = por %p153, %p154
      %p156 = scmp.ne.s32.totalorder %s148, %s151
      %p157 = scmp.eq.s32.totalorder %s18, 0
      %p158 = por %p156, %p157
      %p159 = scmp.ne.s32.totalorder %s148, %s151
      %p160 = scmp.eq.s32.totalorder %s23, 1
      %p161 = por %p159, %p160
      %p162 = scmp.ne.s32.totalorder %s151, %s152
      %p163 = scmp.eq.s32.totalorder %s23, 0
      %p164 = por %p162, %p163
      %p165 = scmp.ne.s32.totalorder %s151, %s152
      %p166 = scmp.eq.s32.totalorder %s24, 1
      %p167 = por %p165, %p166
      %p169 = scmp.ne.s32.totalorder %s152, %s168
      %p170 = scmp.eq.s32.totalorder %s24, 0
      %p171 = por %p169, %p170
      %p172 = scmp.le.s32.totalorder 1, %s18
      %p173 = scmp.lt.s32.totalorder %s18, 3
      %p174 = pnand %p172, %p173
      %p175 = pneg %p174
      // Predicated region
      $region9: #{tpu_custom_call.1} parent=5 // pred_check
        _
      $region10: #{tpu_custom_call.1} parent=5 // pred_check_branch
        %177 = sbr.rel (%p174) target = $region12
      $region11: #{tpu_custom_call.1} parent=5 // pred_region
        %s178 = ssub.s32 %s18, 1
        // Predicated region
        $region13: #{tpu_custom_call.1} parent=11 // pred_check
          %p179 = pneg %p84
        $region14: #{tpu_custom_call.1} parent=11 // pred_check_branch
          %181 = sbr.rel (%p179) target = $region16
        $region15: #{tpu_custom_call.1} parent=11 // pred_region
          %s182 = smul.u32 2, %s27
          %184 = vsyncadd [#allocation6], 0
          %s185 = smul.addr %s182, 8
          %s186 = scalar_lea.hbm %s1, %s185
          %s187 = sshll.u32 %s186, 4
          %s188 = int_to_ptr.hbm [resolvable:$true] %s187
          %s189 = sshll.u32 [#allocation5], 4
          %s190 = int_to_ptr.vmem [resolvable:$true] %s189
          %195 = dma.hbm_to_vmem [thread:$0]  %s188, 256, %s190, [#allocation6], 128, 128, 8
        $region16: #{tpu_custom_call.1} parent=11 // pred_fallthru
          _
        // Predicated region
        $region17: #{tpu_custom_call.1} parent=11 // pred_check
          %p196 = pneg %p110
        $region18: #{tpu_custom_call.1} parent=11 // pred_check_branch
          %198 = sbr.rel (%p196) target = $region20
        $region19: #{tpu_custom_call.1} parent=11 // pred_region
          %s199 = smul.u32 2, %s27
          %201 = vsyncadd [#allocation6], 0
          %s202 = smul.addr %s199, 8
          %s203 = scalar_lea.hbm %s2, %s202
          %s204 = sshll.u32 %s203, 4
          %s205 = int_to_ptr.hbm [resolvable:$true] %s204
          %s206 = sshll.u32 [#allocation7], 4
          %s207 = int_to_ptr.vmem [resolvable:$true] %s206
          %212 = dma.hbm_to_vmem [thread:$0]  %s205, 256, %s207, [#allocation6], 128, 128, 8
        $region20: #{tpu_custom_call.1} parent=11 // pred_fallthru
          _
        // Predicated region
        $region21: #{tpu_custom_call.1} parent=11 // pred_check
          %p213 = pneg %p136
        $region22: #{tpu_custom_call.1} parent=11 // pred_check_branch
          %215 = sbr.rel (%p213) target = $region24
        $region23: #{tpu_custom_call.1} parent=11 // pred_region
          %s216 = smul.u32 2, %s27
          %218 = vsyncadd [#allocation9], 0
          %s219 = smul.addr %s216, 8
          %s220 = scalar_lea.hbm %s3, %s219
          %s221 = sshll.u32 %s220, 4
          %s222 = int_to_ptr.hbm [resolvable:$true] %s221
          %s223 = sshll.u32 [#allocation8], 4
          %s224 = int_to_ptr.vmem [resolvable:$true] %s223
          %229 = dma.hbm_to_vmem [thread:$0]  %s222, 256, %s224, [#allocation9], 128, 128, 8
        $region24: #{tpu_custom_call.1} parent=11 // pred_fallthru
          _
      $region12: #{tpu_custom_call.1} parent=5 // pred_fallthru
        _
      %p230 = scmp.lt.s32.totalorder %s18, 2
      // Predicated region
      $region25: #{tpu_custom_call.1} parent=5 // pred_check
        %p231 = pneg %p230
      $region26: #{tpu_custom_call.1} parent=5 // pred_check_branch
        %233 = sbr.rel (%p231) target = $region28
      $region27: #{tpu_custom_call.1} parent=5 // pred_region
        // Predicated region
        $region29: #{tpu_custom_call.1} parent=27 // pred_check
          %p234 = pneg %p52
        $region30: #{tpu_custom_call.1} parent=27 // pred_check_branch
          %236 = sbr.rel (%p234) target = $region32
        $region31: #{tpu_custom_call.1} parent=27 // pred_region
          %s237 = sand.u32 %s42, 1
          %s238 = scalar_lea.sflag [#allocation3], %s237
          %s239 = sand.u32 %s42, 1
          %s240 = smul.addr %s239, 16
          %s241 = scalar_lea.vmem [#allocation2], %s240
          %s242 = smul.u32 2, %s25
          %244 = vsyncadd %s238, 0
          %s245 = smul.addr %s26, 2
          %s246 = sadd.s32 %s242, %s245
          %s247 = smul.addr %s246, 8
          %s248 = scalar_lea.hbm %s0, %s247
          %s249 = sshll.u32 %s248, 4
          %s250 = int_to_ptr.hbm [resolvable:$true] %s249
          %s251 = sshll.u32 %s241, 4
          %s252 = int_to_ptr.vmem [resolvable:$true] %s251
          %257 = dma.hbm_to_vmem [thread:$0]  %s250, 256, %s252, %s238, 128, 128, 8
        $region32: #{tpu_custom_call.1} parent=27 // pred_fallthru
          _
      $region28: #{tpu_custom_call.1} parent=5 // pred_fallthru
        _
      %p258 = scmp.le.s32.totalorder 1, %s18
      %p259 = scmp.lt.s32.totalorder %s18, 3
      %p260 = pnand %p258, %p259
      %p261 = pneg %p260
      // Predicated region
      $region33: #{tpu_custom_call.1} parent=5 // pred_check
        _
      $region34: #{tpu_custom_call.1} parent=5 // pred_check_branch
        %263 = sbr.rel (%p260) target = $region36
      $region35: #{tpu_custom_call.1} parent=5 // pred_region
        %s264 = ssub.s32 %s18, 1
        %s265 = sand.u32 %s45, 1
        %s266 = scalar_lea.sflag [#allocation3], %s265
        %s267 = sand.u32 %s45, 1
        %s268 = smul.addr %s267, 16
        %s269 = scalar_lea.vmem [#allocation2], %s268
        // Predicated region
        $region37: #{tpu_custom_call.1} parent=35 // pred_check
          %p270 = pneg %p58
        $region38: #{tpu_custom_call.1} parent=35 // pred_check_branch
          %272 = sbr.rel (%p270) target = $region40
        $region39: #{tpu_custom_call.1} parent=35 // pred_region
          %274 = dma.done %s266, 256
        $region40: #{tpu_custom_call.1} parent=35 // pred_fallthru
          _
        // Predicated region
        $region41: #{tpu_custom_call.1} parent=35 // pred_check
          %p275 = pneg %p84
        $region42: #{tpu_custom_call.1} parent=35 // pred_check_branch
          %277 = sbr.rel (%p275) target = $region44
        $region43: #{tpu_custom_call.1} parent=35 // pred_region
          %279 = dma.done [#allocation6], 256
        $region44: #{tpu_custom_call.1} parent=35 // pred_fallthru
          _
        // Predicated region
        $region45: #{tpu_custom_call.1} parent=35 // pred_check
          %p280 = pneg %p110
        $region46: #{tpu_custom_call.1} parent=35 // pred_check_branch
          %282 = sbr.rel (%p280) target = $region48
        $region47: #{tpu_custom_call.1} parent=35 // pred_region
          %284 = dma.done [#allocation6], 256
        $region48: #{tpu_custom_call.1} parent=35 // pred_fallthru
          _
        // Predicated region
        $region49: #{tpu_custom_call.1} parent=35 // pred_check
          %p285 = pneg %p136
        $region50: #{tpu_custom_call.1} parent=35 // pred_check_branch
          %287 = sbr.rel (%p285) target = $region52
        $region51: #{tpu_custom_call.1} parent=35 // pred_region
          %289 = dma.done [#allocation9], 256
        $region52: #{tpu_custom_call.1} parent=35 // pred_fallthru
          _
        %s290 = sand.u32 %s45, 1
        %s291 = scalar_lea.sflag [#allocation3], %s290
        %s292 = sand.u32 %s45, 1
        %s293 = smul.addr %s292, 16
        %s294 = scalar_lea.vmem [#allocation2], %s293
        %p295 = pneg %p58
        %p296 = pneg %p55
        %p297 = pneg %p84
        %p298 = pneg %p81
        %p299 = pneg %p110
        %p300 = pneg %p107
        %p301 = pneg %p136
        %p302 = pneg %p133
        %p303 = pneg %p164
        %p304 = pneg %p161
        %s305 = sand.u32 %s151, 1
        %s306 = scalar_lea.sflag [#allocation4], %s305
        %s307 = sand.u32 %s151, 1
        %s308 = smul.addr %s307, 16
        %s309 = scalar_lea.vmem [#allocation10], %s308
        %s310 = smul.u32 2, %s27
        %s311 = smul.u32 2, %s27
        %s312 = smul.u32 2, %s27
        %s313 = smul.u32 2, %s27
        %s314 = smul.u32 2, %s27
        %v315 = vld [vmem:[%s269] sm:$0xff]
        %v316 = vld [vmem:[%s269 + $0x8] sm:$0xff]
        %319 = vrot.lane.b32.xlu0 %v315, 112
        %v320 = vpop.permute.xlu0 %319
        %321 = vrot.lane.b32.xlu0 %v316, 112
        %v322 = vpop.permute.xlu0 %321
        %325 = vrot.lane.b32.xlu0 %v315, 16
        %v326 = vpop.permute.xlu0 %325
        %327 = vrot.lane.b32.xlu0 %v316, 16
        %v328 = vpop.permute.xlu0 %327
        %v331 = vld [vmem:[#allocation5] sm:$0xff]
        %v332 = vld [vmem:[#allocation5 + $0x8] sm:$0xff]
        %v333 = vmul.f32 %v315, %v331
        %v334 = vmul.f32 %v316, %v332
        %v335 = vld [vmem:[#allocation7] sm:$0xff]
        %v336 = vld [vmem:[#allocation7 + $0x8] sm:$0xff]
        %v337 = vmul.f32 %v320, %v335
        %v338 = vmul.f32 %v322, %v336
        %v339 = vadd.f32 %v333, %v337
        %v340 = vadd.f32 %v334, %v338
        %v341 = vld [vmem:[#allocation8] sm:$0xff]
        %v342 = vld [vmem:[#allocation8 + $0x8] sm:$0xff]
        %v343 = vmul.f32 %v326, %v341
        %v344 = vmul.f32 %v328, %v342
        %v345 = vadd.f32 %v339, %v343
        %v346 = vadd.f32 %v340, %v344
        %347 = vst [vmem:[%s309] sm:$0xff] %v345
        %348 = vst [vmem:[%s309 + $0x8] sm:$0xff] %v346
        %s349 = sand.u32 %s151, 1
        %s350 = scalar_lea.sflag [#allocation4], %s349
        %s351 = sand.u32 %s151, 1
        %s352 = smul.addr %s351, 16
        %s353 = scalar_lea.vmem [#allocation10], %s352
        // Predicated region
        $region53: #{tpu_custom_call.1} parent=35 // pred_check
          %p354 = pneg %p161
        $region54: #{tpu_custom_call.1} parent=35 // pred_check_branch
          %356 = sbr.rel (%p354) target = $region56
        $region55: #{tpu_custom_call.1} parent=35 // pred_region
          %s357 = smul.u32 2, %s27
          %359 = vsyncadd %s350, 0
          %s360 = smul.addr %s28, 2
          %s361 = sadd.s32 %s357, %s360
          %s362 = smul.addr %s361, 8
          %s363 = scalar_lea.hbm %s4, %s362
          %s364 = sshll.u32 %s353, 4
          %s365 = int_to_ptr.vmem [resolvable:$true] %s364
          %s366 = sshll.u32 %s363, 4
          %s367 = int_to_ptr.hbm [resolvable:$true] %s366
          %372 = dma.vmem_to_hbm [thread:$0]  %s365, 256, %s367, %s350, 128, 128, 8
        $region56: #{tpu_custom_call.1} parent=35 // pred_fallthru
          _
      $region36: #{tpu_custom_call.1} parent=5 // pred_fallthru
        _
      %p373 = scmp.le.s32.totalorder 2, %s18
      // Predicated region
      $region57: #{tpu_custom_call.1} parent=5 // pred_check
        %p374 = pneg %p373
      $region58: #{tpu_custom_call.1} parent=5 // pred_check_branch
        %376 = sbr.rel (%p374) target = $region60
      $region59: #{tpu_custom_call.1} parent=5 // pred_region
        %s377 = ssub.s32 %s18, 2
        // Predicated region
        $region61: #{tpu_custom_call.1} parent=59 // pred_check
          %p378 = pneg %p167
        $region62: #{tpu_custom_call.1} parent=59 // pred_check_branch
          %380 = sbr.rel (%p378) target = $region64
        $region63: #{tpu_custom_call.1} parent=59 // pred_region
          %s381 = sand.u32 %s152, 1
          %s382 = scalar_lea.sflag [#allocation4], %s381
          %s383 = sand.u32 %s152, 1
          %s384 = smul.addr %s383, 16
          %s385 = scalar_lea.vmem [#allocation10], %s384
          %387 = dma.done %s382, 256
        $region64: #{tpu_custom_call.1} parent=59 // pred_fallthru
          _
      $region60: #{tpu_custom_call.1} parent=5 // pred_fallthru
        _
    $region6: #{tpu_custom_call.1} parent=1 // loop_footer
      %s22 = sadd.s32 1, %s18
    $region7: #{tpu_custom_call.1} parent=1 // loop_footer_branch
      %17 = sbr.rel target = $region3
    $region8: #{tpu_custom_call.1} parent=1 // loop_exit
      _
    %388 = vsyncpa [#allocation3], 1
    %s389 = scalar_lea.sflag [#allocation3], 1
    %390 = vsyncpa %s389, 1
    %391 = vsyncpa [#allocation6], 1
    %392 = vsyncpa [#allocation9], 1
    %393 = vsyncpa [#allocation4], 1
    %s394 = scalar_lea.sflag [#allocation4], 1
    %395 = vsyncpa %s394, 1

</llo_original>
